<compile_context>
chip_gen: v7x
topology: tpu7x:2x2x1
jax: 0.10.0
libtpu: 0.0.40
codegen_flags: <defaults>
</compile_context>

<pallas_src>
import functools

import jax
import jax.numpy as jnp
from jax import lax
from jax.experimental import pallas as pl
from jax.experimental.pallas import tpu as pltpu

_LANE = 128
_MAX_ROWS_IN_REGS = 128      # hold lane-partials in vregs only up to this many rows
_MAX_STATIC_UNROLL = 16      # fully unroll the chunk loop only when this short


def _round_up(x, m):
    return ((x + m - 1) // m) * m


def channel_attention_kernel(x_ref, w1t_ref, w2t_ref, o_ref,
                             acc_sum_ref, acc_max_ref, *, hw, thw, nk):
    # x_ref   : (tb, C, thw)  current spatial tile (native dtype)
    # w1t_ref : (C, hidden)   fc1 weight, pre-transposed (resident)
    # w2t_ref : (hidden, C)   fc2 weight, pre-transposed (resident)
    # o_ref   : (tb, C)       sigmoid(channel attention), written on last step
    # acc_sum : (tb, C, 128)  f32 running spatial-sum lane partials
    # acc_max : (tb, C, 128)  running spatial-max lane partials (native dtype)
    k = pl.program_id(1)

    @pl.when(k == 0)
    def _init():
        acc_sum_ref[...] = jnp.zeros_like(acc_sum_ref)
        acc_max_ref[...] = jnp.full_like(acc_max_ref, -jnp.inf)

    rows = acc_sum_ref.shape[0] * acc_sum_ref.shape[1]
    hold_in_regs = rows <= _MAX_ROWS_IN_REGS
    n_chunks = thw // _LANE

    def load(c):
        off = pl.multiple_of(c * _LANE, _LANE)
        return x_ref[:, :, pl.ds(off, _LANE)]

    def _accum_full(count):
        """Accumulate `count` full 128-lane chunks; no masking. `count` static."""
        if count == 0:
            return
        if count <= _MAX_STATIC_UNROLL:
            if hold_in_regs:
                s = acc_sum_ref[...]
                m = acc_max_ref[...]
                for c in range(count):
                    ch = load(c)
                    s = s + ch.astype(jnp.float32)
                    m = jnp.maximum(m, ch.astype(m.dtype))
                acc_sum_ref[...] = s
                acc_max_ref[...] = m
            else:
                # Large row count: accumulate through VMEM to bound vreg live
                # ranges (avoids register spills of the (tb,C,128) partials).
                for c in range(count):
                    ch = load(c)
                    acc_sum_ref[...] += ch.astype(jnp.float32)
                    acc_max_ref[...] = jnp.maximum(
                        acc_max_ref[...], ch.astype(acc_max_ref.dtype))
        else:
            if hold_in_regs:
                def body(c, carry):
                    s, m = carry
                    ch = load(c)
                    return (s + ch.astype(jnp.float32),
                            jnp.maximum(m, ch.astype(m.dtype)))
                s, m = lax.fori_loop(0, count, body,
                                     (acc_sum_ref[...], acc_max_ref[...]),
                                     unroll=8)
                acc_sum_ref[...] = s
                acc_max_ref[...] = m
            else:
                def body(c, carry):
                    ch = load(c)
                    acc_sum_ref[...] += ch.astype(jnp.float32)
                    acc_max_ref[...] = jnp.maximum(
                        acc_max_ref[...], ch.astype(acc_max_ref.dtype))
                    return carry
                lax.fori_loop(0, count, body, 0, unroll=8)

    def _accum_masked_tail(c, n_valid):
        """Accumulate the single partial chunk `c` with `n_valid` valid lanes."""
        ch = load(c)
        lane = lax.broadcasted_iota(jnp.int32, ch.shape, 2)
        valid = lane < n_valid
        acc_sum_ref[...] += jnp.where(valid, ch.astype(jnp.float32), 0.0)
        neg = jnp.asarray(-jnp.inf, acc_max_ref.dtype)
        acc_max_ref[...] = jnp.maximum(
            acc_max_ref[...],
            jnp.where(valid, ch.astype(acc_max_ref.dtype), neg))

    # Number of valid lanes in the LAST spatial tile (static).
    rem = hw - (nk - 1) * thw
    if rem == thw:
        # Spatial extent divides the tile: never pay any mask cost.
        _accum_full(n_chunks)
    else:
        rem_full = rem // _LANE
        rem_tail = rem - rem_full * _LANE

        @pl.when(k < nk - 1)
        def _full_tiles():
            _accum_full(n_chunks)

        @pl.when(k == nk - 1)
        def _last_tile():
            _accum_full(rem_full)              # full chunks of the last tile
            if rem_tail > 0:
                _accum_masked_tail(rem_full, rem_tail)   # the one masked chunk

    @pl.when(k == nk - 1)
    def _finalize():
        # Single cross-lane (XLU) reduce: (tb, C, 128) -> (tb, C)
        avg = jnp.sum(acc_sum_ref[...], axis=-1) * (1.0 / hw)          # f32
        mx = jnp.max(acc_max_ref[...], axis=-1).astype(jnp.float32)

        # Stack avg/max into one operand -> one fc1/ReLU/fc2 pass (2 dots, not 4).
        pooled = jnp.concatenate([avg, mx], axis=0)                    # (2*tb, C)
        h = jnp.maximum(
            jnp.dot(pooled, w1t_ref[...], preferred_element_type=jnp.float32),
            0.0)
        y = jnp.dot(h, w2t_ref[...], preferred_element_type=jnp.float32)
        tb = avg.shape[0]
        o_ref[...] = jax.nn.sigmoid(y[:tb] + y[tb:]).astype(o_ref.dtype)


def _pick_tb(B):
    # Two parallel batch blocks (megacore sharding on v7x's 2 TCs) when the
    # batch is large enough to keep each block's sublane dim a multiple of 8.
    if B >= 16 and B % 16 == 0:
        return B // 2
    return B


def _pick_thw(rows, hw, itemsize, vmem_cap):
    # Byte-based tile cap: ~VMEM/8 per input buffer (so the double-buffered
    # input uses ~VMEM/4): ~16 MiB on v5e/v6e (128 MiB VMEM), ~8 MiB on v7x
    # (64 MiB).  Large tiles amortize the ~0.35 us per-grid-step overhead and
    # lengthen each contiguous run of the strided (row-stride = HW) input DMA.
    hw_padded = _round_up(hw, _LANE)
    target_buf_bytes = max(1 << 20, vmem_cap // 8)
    max_lanes = target_buf_bytes // max(1, rows * itemsize)
    max_lanes = max(_LANE, (max_lanes // _LANE) * _LANE)
    return max(_LANE, min(hw_padded, max_lanes))


def channel_attention(x_nchw, w1, w2, *, thw=None):
    """x_nchw: (B, C, H, W); w1: fc1 weight (C//r, C) (or (C//r, C, 1, 1));
    w2: fc2 weight (C, C//r) (or (C, C//r, 1, 1)).
    Returns sigmoid channel attention of shape (B, C, 1, 1) (PyTorch semantics)."""
    B, C, H, W = x_nchw.shape
    HW = H * W
    x_flat = x_nchw.reshape(B, C, HW)

    w1 = jnp.asarray(w1)
    w2 = jnp.asarray(w2)
    w1t = w1.reshape(w1.shape[0], -1).T     # (C, hidden)
    w2t = w2.reshape(w2.shape[0], -1).T     # (hidden, C)
    hidden = w1t.shape[1]

    itemsize = x_flat.dtype.itemsize
    tb = _pick_tb(B)
    nb = B // tb
    rows = tb * C

    try:
        vmem_cap = int(pltpu.get_tpu_info().vmem_capacity_bytes)
    except Exception:
        vmem_cap = 64 * 1024 * 1024         # v7x-safe fallback (smallest VMEM/TC)

    if thw is None:
        thw = _pick_thw(rows, HW, itemsize, vmem_cap)
    thw = max(_LANE, _round_up(int(thw), _LANE))
    nk = pl.cdiv(HW, thw)

    # max() is exact in any dtype -> keep the max accumulator in the input's
    # native dtype (bf16 VALU on v6e/v7x); only the sum accumulator needs f32.
    max_dtype = (x_flat.dtype if jnp.issubdtype(x_flat.dtype, jnp.floating)
                 else jnp.float32)
    max_itemsize = jnp.dtype(max_dtype).itemsize

    w_bytes = w1t.size * w1t.dtype.itemsize + w2t.size * w2t.dtype.itemsize
    needed = (2 * rows * thw * itemsize               # double-buffered input tile
              + rows * _LANE * (4 + max_itemsize)     # lane-partial accumulators
              + 2 * w_bytes                           # resident weights
              + 2 * rows * itemsize)                  # output block
    vmem_limit = int(min(max(needed + (4 << 20), 16 << 20), vmem_cap * 3 // 4))

    cost = pl.CostEstimate(
        flops=2 * B * C * HW + 8 * B * C * hidden,
        transcendentals=B * C,
        bytes_accessed=B * C * HW * itemsize + w_bytes + B * C * itemsize,
    )

    kernel = functools.partial(channel_attention_kernel, hw=HW, thw=thw, nk=nk)

    out = pl.pallas_call(
        kernel,
        out_shape=jax.ShapeDtypeStruct((B, C), x_nchw.dtype),
        grid_spec=pltpu.PrefetchScalarGridSpec(
            num_scalar_prefetch=0,
            grid=(nb, nk),                            # reduction axis innermost
            in_specs=[
                pl.BlockSpec((tb, C, thw), lambda b, k: (b, 0, k)),
                pl.BlockSpec(w1t.shape, lambda b, k: (0, 0)),   # resident weights
                pl.BlockSpec(w2t.shape, lambda b, k: (0, 0)),   # resident weights
            ],
            out_specs=pl.BlockSpec((tb, C), lambda b, k: (b, 0)),
            scratch_shapes=[
                pltpu.VMEM((tb, C, _LANE), jnp.float32),   # running spatial sum
                pltpu.VMEM((tb, C, _LANE), max_dtype),     # running spatial max
            ],
        ),
        compiler_params=pltpu.CompilerParams(
            dimension_semantics=("parallel", "arbitrary"),
            vmem_limit_bytes=vmem_limit,
        ),
        cost_estimate=cost,
    )(x_flat, w1t, w2t)

    return out.reshape(B, C, 1, 1)


def _reference(x, w1, w2):
    # Pure-JAX reference mirroring the PyTorch forward.
    avg = jnp.mean(x, axis=(2, 3))
    mx = jnp.max(x, axis=(2, 3))

    def mlp(p):
        h = jnp.maximum(p @ w1.T, 0.0)
        return h @ w2.T

    return jax.nn.sigmoid(mlp(avg) + mlp(mx)).reshape(x.shape[0], x.shape[1], 1, 1)


def _make_inputs(key, B, C, H, W, ratio=8):
    hidden = max(1, C // ratio)
    kx, k1, k2 = jax.random.split(key, 3)
    x = jax.random.normal(kx, (B, C, H, W), dtype=jnp.float32)
    w1 = jax.random.normal(k1, (hidden, C), dtype=jnp.float32) * (1.0 / C) ** 0.5
    w2 = jax.random.normal(k2, (C, hidden), dtype=jnp.float32) * (1.0 / hidden) ** 0.5
    return x, w1, w2


def _check(name, x, w1, w2, **kw):
    ref = _reference(x, w1, w2)
    out = jax.block_until_ready(channel_attention(x, w1, w2, **kw))
    assert out.shape == ref.shape, (name, out.shape, ref.shape)
    assert jnp.allclose(out, ref, atol=1e-5, rtol=1e-5), f"mismatch vs reference: {name}"


if __name__ == "__main__":
    key = jax.random.PRNGKey(0)
    k0, k1, k2, k3 = jax.random.split(key, 4)

    # 1) forced multi-step grid, exact division (init/accumulate/finalize path)
    x, w1, w2 = _make_inputs(k0, 2, 32, 16, 16)
    _check("tiled", x, w1, w2, thw=128)
    # 2) auto tile sizing (single spatial block)
    _check("auto", x, w1, w2)

    # 3) ragged spatial extent: last tile partially valid (single masked chunk)
    xr, w1r, w2r = _make_inputs(k1, 2, 32, 16, 12)
    _check("ragged", xr, w1r, w2r, thw=128)

    # 4) larger batch: parallel grid axis over batch blocks + VMEM write-back
    #    accumulation path (rows > register budget)
    xb, w1b, w2b = _make_inputs(k2, 16, 32, 16, 16)
    _check("batched", xb, w1b, w2b)

    # 5) long spatial axis: fori_loop(unroll=8) chunk loop
    xl, w1l, w2l = _make_inputs(k3, 1, 8, 64, 48)
    _check("long-hw", xl, w1l, w2l)

    print("KERNEL_OK")
</pallas_src>

<mosaic_0001>
module attributes {stable_mosaic.version = 11 : i64} {
  func.func @channel_attention_kernel(%arg0: i32, %arg1: i32, %arg2: memref<2x32x128xf32, #tpu.memory_space<vmem>>, %arg3: memref<32x4xf32, #tpu.memory_space<vmem>>, %arg4: memref<4x32xf32, #tpu.memory_space<vmem>>, %arg5: memref<2x32xf32, #tpu.memory_space<vmem>>, %arg6: memref<2x32x128xf32, #tpu.memory_space<vmem>>, %arg7: memref<2x32x128xf32, #tpu.memory_space<vmem>>) attributes {dimension_semantics = [#tpu.dimension_semantics<parallel>, #tpu.dimension_semantics<arbitrary>], iteration_bounds = array<i64: 1, 2>, scalar_prefetch = 0 : i64, scratch_operands = 2 : i64, tpu.core_type = #tpu.core_type<tc>, window_params = [{transform_indices = @transform_0, window_bounds = array<i64: 2, 32, 128>}, {pipeline_mode = #tpu.pipeline_mode<synchronous>, transform_indices = @transform_1, window_bounds = array<i64: 32, 4>}, {pipeline_mode = #tpu.pipeline_mode<synchronous>, transform_indices = @transform_2, window_bounds = array<i64: 4, 32>}, {transform_indices = @transform_3, window_bounds = array<i64: 2, 32>}]} {
    %c0_i32 = arith.constant 0 : i32
    %0 = arith.cmpi eq, %arg1, %c0_i32 : i32
    %1 = arith.extui %0 : i1 to i32
    %c0_i32_0 = arith.constant 0 : i32
    %2 = arith.cmpi ne, %1, %c0_i32_0 : i32
    scf.if %2 {
      %cst = arith.constant 0.000000e+00 : f32
      %15 = vector.broadcast %cst : f32 to vector<2x32x128xf32>
      %c0_16 = arith.constant 0 : index
      %c0_17 = arith.constant 0 : index
      %c0_18 = arith.constant 0 : index
      %16 = vector.load %arg6[%c0_16, %c0_17, %c0_18] : memref<2x32x128xf32, #tpu.memory_space<vmem>>, vector<2x32x128xf32>
      tpu.vector_store %arg6[%c0_16, %c0_17, %c0_18], %15 {strides = array<i32>} : memref<2x32x128xf32, #tpu.memory_space<vmem>>, vector<2x32x128xf32>,
      %cst_19 = arith.constant 0xFF800000 : f32
      %17 = vector.broadcast %cst_19 : f32 to vector<2x32x128xf32>
      %c0_20 = arith.constant 0 : index
      %c0_21 = arith.constant 0 : index
      %c0_22 = arith.constant 0 : index
      %18 = vector.load %arg7[%c0_20, %c0_21, %c0_22] : memref<2x32x128xf32, #tpu.memory_space<vmem>>, vector<2x32x128xf32>
      tpu.vector_store %arg7[%c0_20, %c0_21, %c0_22], %17 {strides = array<i32>} : memref<2x32x128xf32, #tpu.memory_space<vmem>>, vector<2x32x128xf32>,
    } else {
    }
    %c0 = arith.constant 0 : index
    %c0_1 = arith.constant 0 : index
    %c0_2 = arith.constant 0 : index
    %3 = vector.load %arg6[%c0, %c0_1, %c0_2] : memref<2x32x128xf32, #tpu.memory_space<vmem>>, vector<2x32x128xf32>
    %c0_3 = arith.constant 0 : index
    %c0_4 = arith.constant 0 : index
    %c0_5 = arith.constant 0 : index
    %4 = vector.load %arg7[%c0_3, %c0_4, %c0_5] : memref<2x32x128xf32, #tpu.memory_space<vmem>>, vector<2x32x128xf32>
    %c0_i32_6 = arith.constant 0 : i32
    %5 = tpu.assume_multiple %c0_i32_6, 128 : i32
    %c0_7 = arith.constant 0 : index
    %c0_8 = arith.constant 0 : index
    %6 = arith.index_cast %5 : i32 to index
    %7 = vector.load %arg2[%c0_7, %c0_8, %6] : memref<2x32x128xf32, #tpu.memory_space<vmem>>, vector<2x32x128xf32>
    %8 = arith.addf %3, %7 : vector<2x32x128xf32>
    %9 = arith.maximumf %4, %7 : vector<2x32x128xf32>
    %c0_9 = arith.constant 0 : index
    %c0_10 = arith.constant 0 : index
    %c0_11 = arith.constant 0 : index
    %10 = vector.load %arg6[%c0_9, %c0_10, %c0_11] : memref<2x32x128xf32, #tpu.memory_space<vmem>>, vector<2x32x128xf32>
    tpu.vector_store %arg6[%c0_9, %c0_10, %c0_11], %8 {strides = array<i32>} : memref<2x32x128xf32, #tpu.memory_space<vmem>>, vector<2x32x128xf32>,
    %c0_12 = arith.constant 0 : index
    %c0_13 = arith.constant 0 : index
    %c0_14 = arith.constant 0 : index
    %11 = vector.load %arg7[%c0_12, %c0_13, %c0_14] : memref<2x32x128xf32, #tpu.memory_space<vmem>>, vector<2x32x128xf32>
    tpu.vector_store %arg7[%c0_12, %c0_13, %c0_14], %9 {strides = array<i32>} : memref<2x32x128xf32, #tpu.memory_space<vmem>>, vector<2x32x128xf32>,
    %c1_i32 = arith.constant 1 : i32
    %12 = arith.cmpi eq, %arg1, %c1_i32 : i32
    %13 = arith.extui %12 : i1 to i32
    %c0_i32_15 = arith.constant 0 : i32
    %14 = arith.cmpi ne, %13, %c0_i32_15 : i32
    scf.if %14 {
      %c0_16 = arith.constant 0 : index
      %c0_17 = arith.constant 0 : index
      %c0_18 = arith.constant 0 : index
      %15 = vector.load %arg6[%c0_16, %c0_17, %c0_18] : memref<2x32x128xf32, #tpu.memory_space<vmem>>, vector<2x32x128xf32>
      %cst = arith.constant dense<0.000000e+00> : vector<2x32xf32>
      %16 = vector.multi_reduction <add>, %15, %cst [2] : vector<2x32x128xf32> to vector<2x32xf32>
      %cst_19 = arith.constant 3.906250e-03 : f32
      %17 = vector.broadcast %cst_19 : f32 to vector<2x32xf32>
      %18 = arith.mulf %16, %17 : vector<2x32xf32>
      %c0_20 = arith.constant 0 : index
      %c0_21 = arith.constant 0 : index
      %c0_22 = arith.constant 0 : index
      %19 = vector.load %arg7[%c0_20, %c0_21, %c0_22] : memref<2x32x128xf32, #tpu.memory_space<vmem>>, vector<2x32x128xf32>
      %cst_23 = arith.constant dense<0xFF800000> : vector<2x32xf32>
      %20 = vector.multi_reduction <maximumf>, %19, %cst_23 [2] : vector<2x32x128xf32> to vector<2x32xf32>
      %21 = tpu.concatenate %18, %20 in 0 : vector<2x32xf32>, vector<2x32xf32> -> vector<4x32xf32>
      %c0_24 = arith.constant 0 : index
      %c0_25 = arith.constant 0 : index
      %22 = vector.load %arg3[%c0_24, %c0_25] : memref<32x4xf32, #tpu.memory_space<vmem>>, vector<32x4xf32>
      %cst_26 = arith.constant dense<0.000000e+00> : vector<4x4xf32>
      %23 = tpu.matmul %21, %22, %cst_26 {dimension_numbers = #tpu.dot_dimension_numbers<[1], [0], [0], [1], [0, 0, 1, 1], [], []>} : vector<4x32xf32>, vector<32x4xf32>, vector<4x4xf32> -> vector<4x4xf32>
      %cst_27 = arith.constant 0.000000e+00 : f32
      %24 = vector.broadcast %cst_27 : f32 to vector<4x4xf32>
      %25 = arith.maximumf %23, %24 : vector<4x4xf32>
      %c0_28 = arith.constant 0 : index
      %c0_29 = arith.constant 0 : index
      %26 = vector.load %arg4[%c0_28, %c0_29] : memref<4x32xf32, #tpu.memory_space<vmem>>, vector<4x32xf32>
      %cst_30 = arith.constant dense<0.000000e+00> : vector<4x32xf32>
      %27 = tpu.matmul %25, %26, %cst_30 {dimension_numbers = #tpu.dot_dimension_numbers<[1], [0], [0], [1], [0, 0, 1, 1], [], []>} : vector<4x4xf32>, vector<4x32xf32>, vector<4x32xf32> -> vector<4x32xf32>
      %28 = vector.extract_strided_slice %27 {offsets = [0, 0], sizes = [2, 32], strides = [1, 1]} : vector<4x32xf32> to vector<2x32xf32>
      %29 = vector.extract_strided_slice %27 {offsets = [2, 0], sizes = [2, 32], strides = [1, 1]} : vector<4x32xf32> to vector<2x32xf32>
      %30 = arith.addf %28, %29 : vector<2x32xf32>
      %31 = arith.negf %30 : vector<2x32xf32>
      %32 = math.exp %31 : vector<2x32xf32>
      %cst_31 = arith.constant 1.000000e+00 : f32
      %33 = vector.broadcast %cst_31 : f32 to vector<2x32xf32>
      %34 = arith.addf %33, %32 : vector<2x32xf32>
      %35 = arith.divf %33, %34 : vector<2x32xf32>
      %c0_32 = arith.constant 0 : index
      %c0_33 = arith.constant 0 : index
      %36 = vector.load %arg5[%c0_32, %c0_33] : memref<2x32xf32, #tpu.memory_space<vmem>>, vector<2x32xf32>
      tpu.vector_store %arg5[%c0_32, %c0_33], %35 {strides = array<i32>} : memref<2x32xf32, #tpu.memory_space<vmem>>, vector<2x32xf32>,
    } else {
    }
    return
  }
  func.func @transform_0(%arg0: i32, %arg1: i32) -> (i32, i32, i32) {
    %c0_i32 = arith.constant 0 : i32
    %c0_i32_0 = arith.constant 0 : i32
    return %arg0, %c0_i32, %arg1 : i32, i32, i32
  }
  func.func @transform_1(%arg0: i32, %arg1: i32) -> (i32, i32) {
    %c0_i32 = arith.constant 0 : i32
    %c0_i32_0 = arith.constant 0 : i32
    %c0_i32_1 = arith.constant 0 : i32
    return %c0_i32, %c0_i32_0 : i32, i32
  }
  func.func @transform_2(%arg0: i32, %arg1: i32) -> (i32, i32) {
    %c0_i32 = arith.constant 0 : i32
    %c0_i32_0 = arith.constant 0 : i32
    %c0_i32_1 = arith.constant 0 : i32
    return %c0_i32, %c0_i32_0 : i32, i32
  }
  func.func @transform_3(%arg0: i32, %arg1: i32) -> (i32, i32) {
    %c0_i32 = arith.constant 0 : i32
    %c0_i32_0 = arith.constant 0 : i32
    return %arg0, %c0_i32 : i32, i32
  }
}

</mosaic_0001>

<llo_original>
// kernel: tpu_custom_call.1
$region0: #{tpu_custom_call.1}
  #allocation0 [shape = 'u32[]', space=smem, size = 0x4, offset = 0x4, fixed_abs, tag = 'smem constant byte address 0x4 - core index']
  #allocation1 [shape = 'u32[144,128]{1,0:T(1,128)}', space=vmem, size = 0x12000, scoped, tag = 'internal scratch']
  #allocation2 [shape = 'f32[2,32,128]{2,1,0:T(8,128)}', space=vmem, size = 0x8000, scoped, tag = 'scratch operand']
  #allocation3 [shape = 'f32[2,32,128]{2,1,0:T(8,128)}', space=vmem, size = 0x8000, scoped, tag = 'scratch operand']
  %s0 = inlined_call_operand.hbm [shape: f32[2,32,256], index: 0, kind: input, shape index: {}]
  %s1 = inlined_call_operand.vmem [shape: f32[32,4], index: 1, kind: input, shape index: {}]
  %s2 = inlined_call_operand.vmem [shape: f32[4,32], index: 2, kind: input, shape index: {}]
  %s3 = inlined_call_operand.hbm [shape: f32[2,32], index: 3, kind: output, shape index: {}]
  %s4 = sld [smem:[#allocation0]]
  $region57: #{tpu_custom_call.1} parent=0
    _
  %s6 = ssub.s32 1, %s4
  %s7 = scalar_select 0, %s6, %s4
  $region1: #{tpu_custom_call.1} parent=0
    #allocation4 [shape = 'u8[65536]{0}', space=vmem, size = 0x10000, scoped, tag = 'input window, operand 0']
    #allocation5 [shape = 's32[2]{0}', space=sflag, size = 0x8, scoped, tag = 'scoped memory for tpu_custom_call.1']
    #allocation6 [shape = 's32[2]{0}', space=sflag, size = 0x8, scoped, tag = 'scoped memory for tpu_custom_call.1']
    #allocation7 [shape = 'u8[1024]{0}', space=vmem, size = 0x400, scoped, tag = 'output window, operand 0, single buffered']
    %8 = vsyncpa [#allocation5], 0
    %s9 = scalar_lea.sflag [#allocation5], 1
    %10 = vsyncpa %s9, 0
    %11 = vsyncpa [#allocation6], 0
    loop: start=0, step=1, limit=4
    $region2: #{tpu_custom_call.1} parent=1 // loop_pre_header
      _
    $region3: #{tpu_custom_call.1} parent=1 // loop_header
      %s13 = sphi 0, %s17
      %p14 = scmp.ge.s32.totalorder %s13, 4
      %s20 = sphi 0, %s32
      %s21 = sphi 0, %s28
      %s22 = sphi 0, %s20
      %s23 = sphi 0, %s21
      %s24 = sphi 0, %s22
      %s25 = sphi 0, %s23
      %s37 = sphi 0, %s39
      %s40 = sphi 0, %s37
      %s41 = sphi 0, %s40
      %s57 = sphi 0, %s41
      %s61 = sphi 0, %s61
      %s63 = sphi 0, %s61
      %s64 = sphi 0, %s63
      %s78 = sphi 0, %s64
      %s82 = sphi 0, %s82
      %s84 = sphi 0, %s82
      %s85 = sphi 0, %s84
      %s99 = sphi 0, %s85
      %s105 = sphi 0, %s107
      %s108 = sphi 0, %s105
      %s109 = sphi 0, %s108
      %s125 = sphi 0, %s109
    $region4: #{tpu_custom_call.1} parent=1 // loop_header_branch
      %16 = sbr.rel (%p14) target = $region8
    $region5: #{tpu_custom_call.1} parent=1 // loop_body
      %s18 = ssub.s32 %s13, 1
      %s19 = ssub.s32 %s13, 2
      %s26 = sadd.s32 1, %s21
      %p27 = scmp.ge.s32.totalorder %s26, 2
      %s28 = scalar_select %p27, 0, %s26
      %s29 = sadd.s32 1, %s20
      %s30 = scalar_select %p27, %s29, %s20
      %p31 = scmp.ge.s32.totalorder %s30, 1
      %s32 = scalar_select %p31, 0, %s30
      %s33 = ssub.s32 %s20, %s32
      %s34 = ssub.s32 %s21, %s28
      %s35 = sor.u32 %s33, %s34
      %p36 = scmp.eq.s32.totalorder %s35, 0
      %s38 = sadd.s32 %s37, 1
      %s39 = scalar_select %p36, %s37, %s38
      %p42 = pneg %p36
      %p43 = scmp.eq.s32.totalorder %s13, 1
      %p44 = por %p42, %p43
      %p45 = scmp.ne.s32.totalorder %s37, %s40
      %p46 = scmp.eq.s32.totalorder %s13, 0
      %p47 = por %p45, %p46
      %p48 = scmp.ne.s32.totalorder %s37, %s40
      %p49 = scmp.eq.s32.totalorder %s18, 1
      %p50 = por %p48, %p49
      %p51 = scmp.ne.s32.totalorder %s40, %s41
      %p52 = scmp.eq.s32.totalorder %s18, 0
      %p53 = por %p51, %p52
      %p54 = scmp.ne.s32.totalorder %s40, %s41
      %p55 = scmp.eq.s32.totalorder %s19, 1
      %p56 = por %p54, %p55
      %p58 = scmp.ne.s32.totalorder %s41, %s57
      %p59 = scmp.eq.s32.totalorder %s19, 0
      %p60 = por %p58, %p59
      %s62 = sadd.s32 %s61, 1
      %p65 = scmp.eq.s32.totalorder %s13, 1
      %p66 = scmp.ne.s32.totalorder %s61, %s63
      %p67 = scmp.eq.s32.totalorder %s13, 0
      %p68 = por %p66, %p67
      %p69 = scmp.ne.s32.totalorder %s61, %s63
      %p70 = scmp.eq.s32.totalorder %s18, 1
      %p71 = por %p69, %p70
      %p72 = scmp.ne.s32.totalorder %s63, %s64
      %p73 = scmp.eq.s32.totalorder %s18, 0
      %p74 = por %p72, %p73
      %p75 = scmp.ne.s32.totalorder %s63, %s64
      %p76 = scmp.eq.s32.totalorder %s19, 1
      %p77 = por %p75, %p76
      %p79 = scmp.ne.s32.totalorder %s64, %s78
      %p80 = scmp.eq.s32.totalorder %s19, 0
      %p81 = por %p79, %p80
      %s83 = sadd.s32 %s82, 1
      %p86 = scmp.eq.s32.totalorder %s13, 1
      %p87 = scmp.ne.s32.totalorder %s82, %s84
      %p88 = scmp.eq.s32.totalorder %s13, 0
      %p89 = por %p87, %p88
      %p90 = scmp.ne.s32.totalorder %s82, %s84
      %p91 = scmp.eq.s32.totalorder %s18, 1
      %p92 = por %p90, %p91
      %p93 = scmp.ne.s32.totalorder %s84, %s85
      %p94 = scmp.eq.s32.totalorder %s18, 0
      %p95 = por %p93, %p94
      %p96 = scmp.ne.s32.totalorder %s84, %s85
      %p97 = scmp.eq.s32.totalorder %s19, 1
      %p98 = por %p96, %p97
      %p100 = scmp.ne.s32.totalorder %s85, %s99
      %p101 = scmp.eq.s32.totalorder %s19, 0
      %p102 = por %p100, %p101
      %s103 = ssub.s32 %s20, %s32
      %p104 = scmp.eq.s32.totalorder %s103, 0
      %s106 = sadd.s32 %s105, 1
      %s107 = scalar_select %p104, %s105, %s106
      %p110 = pneg %p104
      %p111 = scmp.eq.s32.totalorder %s13, 1
      %p112 = por %p110, %p111
      %p113 = scmp.ne.s32.totalorder %s105, %s108
      %p114 = scmp.eq.s32.totalorder %s13, 0
      %p115 = por %p113, %p114
      %p116 = scmp.ne.s32.totalorder %s105, %s108
      %p117 = scmp.eq.s32.totalorder %s18, 1
      %p118 = por %p116, %p117
      %p119 = scmp.ne.s32.totalorder %s108, %s109
      %p120 = scmp.eq.s32.totalorder %s18, 0
      %p121 = por %p119, %p120
      %p122 = scmp.ne.s32.totalorder %s108, %s109
      %p123 = scmp.eq.s32.totalorder %s19, 1
      %p124 = por %p122, %p123
      %p126 = scmp.ne.s32.totalorder %s109, %s125
      %p127 = scmp.eq.s32.totalorder %s19, 0
      %p128 = por %p126, %p127
      %p129 = scmp.le.s32.totalorder 1, %s13
      %p130 = scmp.lt.s32.totalorder %s13, 3
      %p131 = pnand %p129, %p130
      %p132 = pneg %p131
      // Predicated region
      $region9: #{tpu_custom_call.1} parent=5 // pred_check
        _
      $region10: #{tpu_custom_call.1} parent=5 // pred_check_branch
        %134 = sbr.rel (%p131) target = $region12
      $region11: #{tpu_custom_call.1} parent=5 // pred_region
        %s135 = ssub.s32 %s13, 1
        // Predicated region
        $region13: #{tpu_custom_call.1} parent=11 // pred_check
          %p136 = pneg %p74
        $region14: #{tpu_custom_call.1} parent=11 // pred_check_branch
          %138 = sbr.rel (%p136) target = $region16
        $region15: #{tpu_custom_call.1} parent=11 // pred_region
          _
        $region16: #{tpu_custom_call.1} parent=11 // pred_fallthru
          _
        // Predicated region
        $region17: #{tpu_custom_call.1} parent=11 // pred_check
          %p139 = pneg %p95
        $region18: #{tpu_custom_call.1} parent=11 // pred_check_branch
          %141 = sbr.rel (%p139) target = $region20
        $region19: #{tpu_custom_call.1} parent=11 // pred_region
          _
        $region20: #{tpu_custom_call.1} parent=11 // pred_fallthru
          _
      $region12: #{tpu_custom_call.1} parent=5 // pred_fallthru
        _
      %p142 = scmp.lt.s32.totalorder %s13, 2
      // Predicated region
      $region21: #{tpu_custom_call.1} parent=5 // pred_check
        %p143 = pneg %p142
      $region22: #{tpu_custom_call.1} parent=5 // pred_check_branch
        %145 = sbr.rel (%p143) target = $region24
      $region23: #{tpu_custom_call.1} parent=5 // pred_region
        // Predicated region
        $region25: #{tpu_custom_call.1} parent=23 // pred_check
          %p146 = pneg %p47
        $region26: #{tpu_custom_call.1} parent=23 // pred_check_branch
          %148 = sbr.rel (%p146) target = $region28
        $region27: #{tpu_custom_call.1} parent=23 // pred_region
          %s149 = sand.u32 %s37, 1
          %s150 = scalar_lea.sflag [#allocation5], %s149
          %s151 = sand.u32 %s37, 1
          %s152 = smul.addr %s151, 64
          %s153 = scalar_lea.vmem [#allocation4], %s152
          %s154 = smul.u32 2, %s20
          %s156 = ssub.s32 1024, 1024
          %157 = vsyncadd %s150, %s156
          %s158 = smul.addr %s154, 8
          %s159 = sadd.s32 %s21, %s158
          %s160 = smul.addr %s159, 128
          %s161 = scalar_lea.hbm %s0, %s160
          %s162 = sshll.u32 %s153, 4
          %s163 = int_to_ptr.vmem [resolvable:$true] %s162
          %168 = dma.hbm_to_vmem [thread:$0]  %s161, 1024, %s163, %s150, 256, 128, 8
        $region28: #{tpu_custom_call.1} parent=23 // pred_fallthru
          _
      $region24: #{tpu_custom_call.1} parent=5 // pred_fallthru
        _
      %p169 = scmp.le.s32.totalorder 1, %s13
      %p170 = scmp.lt.s32.totalorder %s13, 3
      %p171 = pnand %p169, %p170
      %p172 = pneg %p171
      // Predicated region
      $region29: #{tpu_custom_call.1} parent=5 // pred_check
        _
      $region30: #{tpu_custom_call.1} parent=5 // pred_check_branch
        %174 = sbr.rel (%p171) target = $region32
      $region31: #{tpu_custom_call.1} parent=5 // pred_region
        %s175 = ssub.s32 %s13, 1
        %s176 = sand.u32 %s40, 1
        %s177 = scalar_lea.sflag [#allocation5], %s176
        %s178 = sand.u32 %s40, 1
        %s179 = smul.addr %s178, 64
        %s180 = scalar_lea.vmem [#allocation4], %s179
        // Predicated region
        $region33: #{tpu_custom_call.1} parent=31 // pred_check
          %p181 = pneg %p53
        $region34: #{tpu_custom_call.1} parent=31 // pred_check_branch
          %183 = sbr.rel (%p181) target = $region36
        $region35: #{tpu_custom_call.1} parent=31 // pred_region
          %184 = dma.done %s177, 1024
        $region36: #{tpu_custom_call.1} parent=31 // pred_fallthru
          _
        %s185 = sand.u32 %s40, 1
        %s186 = scalar_lea.sflag [#allocation5], %s185
        %s187 = sand.u32 %s40, 1
        %s188 = smul.addr %s187, 64
        %s189 = scalar_lea.vmem [#allocation4], %s188
        %p190 = pneg %p53
        %p191 = pneg %p50
        %p192 = pneg %p74
        %p193 = pneg %p71
        %p194 = pneg %p95
        %p195 = pneg %p92
        %p196 = pneg %p121
        %p197 = pneg %p118
        %s198 = smul.u32 2, %s22
        %p199 = scmp.eq.s32.totalorder %s23, 0
        // Predicated region
        $region37: #{tpu_custom_call.1} parent=31 // pred_check
          %p200 = pneg %p199
        $region38: #{tpu_custom_call.1} parent=31 // pred_check_branch
          %202 = sbr.rel (%p200) target = $region40
        $region39: #{tpu_custom_call.1} parent=31 // pred_region
          %203 = vst [vmem:[#allocation2] sm:$0xff] 0.0
          %204 = vst [vmem:[#allocation2 + $0x8] sm:$0xff] 0.0
          %205 = vst [vmem:[#allocation2 + $0x10] sm:$0xff] 0.0
          %206 = vst [vmem:[#allocation2 + $0x18] sm:$0xff] 0.0
          %207 = vst [vmem:[#allocation2 + $0x20] sm:$0xff] 0.0
          %208 = vst [vmem:[#allocation2 + $0x28] sm:$0xff] 0.0
          %209 = vst [vmem:[#allocation2 + $0x30] sm:$0xff] 0.0
          %210 = vst [vmem:[#allocation2 + $0x38] sm:$0xff] 0.0
          %211 = vst [vmem:[#allocation3] sm:$0xff] -inf
          %212 = vst [vmem:[#allocation3 + $0x8] sm:$0xff] -inf
          %213 = vst [vmem:[#allocation3 + $0x10] sm:$0xff] -inf
          %214 = vst [vmem:[#allocation3 + $0x18] sm:$0xff] -inf
          %215 = vst [vmem:[#allocation3 + $0x20] sm:$0xff] -inf
          %216 = vst [vmem:[#allocation3 + $0x28] sm:$0xff] -inf
          %217 = vst [vmem:[#allocation3 + $0x30] sm:$0xff] -inf
          %218 = vst [vmem:[#allocation3 + $0x38] sm:$0xff] -inf
        $region40: #{tpu_custom_call.1} parent=31 // pred_fallthru
          _
        %v219 = vld [vmem:[#allocation2] sm:$0xff]
        %v220 = vld [vmem:[#allocation2 + $0x8] sm:$0xff]
        %v221 = vld [vmem:[#allocation2 + $0x10] sm:$0xff]
        %v222 = vld [vmem:[#allocation2 + $0x18] sm:$0xff]
        %v223 = vld [vmem:[#allocation2 + $0x20] sm:$0xff]
        %v224 = vld [vmem:[#allocation2 + $0x28] sm:$0xff]
        %v225 = vld [vmem:[#allocation2 + $0x30] sm:$0xff]
        %v226 = vld [vmem:[#allocation2 + $0x38] sm:$0xff]
        %v227 = vld [vmem:[#allocation3] sm:$0xff]
        %v228 = vld [vmem:[#allocation3 + $0x8] sm:$0xff]
        %v229 = vld [vmem:[#allocation3 + $0x10] sm:$0xff]
        %v230 = vld [vmem:[#allocation3 + $0x18] sm:$0xff]
        %v231 = vld [vmem:[#allocation3 + $0x20] sm:$0xff]
        %v232 = vld [vmem:[#allocation3 + $0x28] sm:$0xff]
        %v233 = vld [vmem:[#allocation3 + $0x30] sm:$0xff]
        %v234 = vld [vmem:[#allocation3 + $0x38] sm:$0xff]
        %v235 = vld [vmem:[%s180] sm:$0xff]
        %v236 = vld [vmem:[%s180 + $0x8] sm:$0xff]
        %v237 = vld [vmem:[%s180 + $0x10] sm:$0xff]
        %v238 = vld [vmem:[%s180 + $0x18] sm:$0xff]
        %v239 = vld [vmem:[%s180 + $0x20] sm:$0xff]
        %v240 = vld [vmem:[%s180 + $0x28] sm:$0xff]
        %v241 = vld [vmem:[%s180 + $0x30] sm:$0xff]
        %v242 = vld [vmem:[%s180 + $0x38] sm:$0xff]
        %v243 = vadd.f32 %v219, %v235
        %v244 = vadd.f32 %v220, %v236
        %v245 = vadd.f32 %v221, %v237
        %v246 = vadd.f32 %v222, %v238
        %v247 = vadd.f32 %v223, %v239
        %v248 = vadd.f32 %v224, %v240
        %v249 = vadd.f32 %v225, %v241
        %v250 = vadd.f32 %v226, %v242
        %v251 = vmax.f32 %v227, %v235
        %v252 = vmax.f32 %v228, %v236
        %v253 = vmax.f32 %v229, %v237
        %v254 = vmax.f32 %v230, %v238
        %v255 = vmax.f32 %v231, %v239
        %v256 = vmax.f32 %v232, %v240
        %v257 = vmax.f32 %v233, %v241
        %v258 = vmax.f32 %v234, %v242
        %259 = vst [vmem:[#allocation2] sm:$0xff] %v243
        %260 = vst [vmem:[#allocation2 + $0x8] sm:$0xff] %v244
        %261 = vst [vmem:[#allocation2 + $0x10] sm:$0xff] %v245
        %262 = vst [vmem:[#allocation2 + $0x18] sm:$0xff] %v246
        %263 = vst [vmem:[#allocation2 + $0x20] sm:$0xff] %v247
        %264 = vst [vmem:[#allocation2 + $0x28] sm:$0xff] %v248
        %265 = vst [vmem:[#allocation2 + $0x30] sm:$0xff] %v249
        %266 = vst [vmem:[#allocation2 + $0x38] sm:$0xff] %v250
        %267 = vst [vmem:[#allocation3] sm:$0xff] %v251
        %268 = vst [vmem:[#allocation3 + $0x8] sm:$0xff] %v252
        %269 = vst [vmem:[#allocation3 + $0x10] sm:$0xff] %v253
        %270 = vst [vmem:[#allocation3 + $0x18] sm:$0xff] %v254
        %271 = vst [vmem:[#allocation3 + $0x20] sm:$0xff] %v255
        %272 = vst [vmem:[#allocation3 + $0x28] sm:$0xff] %v256
        %273 = vst [vmem:[#allocation3 + $0x30] sm:$0xff] %v257
        %274 = vst [vmem:[#allocation3 + $0x38] sm:$0xff] %v258
        %p275 = scmp.eq.s32.totalorder %s23, 1
        // Predicated region
        $region41: #{tpu_custom_call.1} parent=31 // pred_check
          %p276 = pneg %p275
        $region42: #{tpu_custom_call.1} parent=31 // pred_check_branch
          %278 = sbr.rel (%p276) target = $region44
        $region43: #{tpu_custom_call.1} parent=31 // pred_region
          %v279 = vld [vmem:[#allocation2] sm:$0xff]
          %v280 = vld [vmem:[#allocation2 + $0x8] sm:$0xff]
          %v281 = vld [vmem:[#allocation2 + $0x10] sm:$0xff]
          %v282 = vld [vmem:[#allocation2 + $0x18] sm:$0xff]
          %v283 = vld [vmem:[#allocation2 + $0x20] sm:$0xff]
          %v284 = vld [vmem:[#allocation2 + $0x28] sm:$0xff]
          %v285 = vld [vmem:[#allocation2 + $0x30] sm:$0xff]
          %v286 = vld [vmem:[#allocation2 + $0x38] sm:$0xff]
          %287 = vadd.xlane.f32.xlu0 %v279
          %v288 = vpop.xlane.xlu0 %287
          %289 = vadd.xlane.f32.xlu0 %v280
          %v290 = vpop.xlane.xlu0 %289
          %291 = vadd.xlane.f32.xlu0 %v281
          %v292 = vpop.xlane.xlu0 %291
          %293 = vadd.xlane.f32.xlu0 %v282
          %v294 = vpop.xlane.xlu0 %293
          %295 = vadd.xlane.f32.xlu0 %v283
          %v296 = vpop.xlane.xlu0 %295
          %297 = vadd.xlane.f32.xlu0 %v284
          %v298 = vpop.xlane.xlu0 %297
          %299 = vadd.xlane.f32.xlu0 %v285
          %v300 = vpop.xlane.xlu0 %299
          %301 = vadd.xlane.f32.xlu0 %v286
          %v302 = vpop.xlane.xlu0 %301
          %v303 = vmul.f32 %v288, 0.00390625
          %v304 = vmul.f32 %v290, 0.00390625
          %v305 = vmul.f32 %v292, 0.00390625
          %v306 = vmul.f32 %v294, 0.00390625
          %v307 = vmul.f32 %v296, 0.00390625
          %v308 = vmul.f32 %v298, 0.00390625
          %v309 = vmul.f32 %v300, 0.00390625
          %v310 = vmul.f32 %v302, 0.00390625
          %v311 = vld [vmem:[#allocation3] sm:$0xff]
          %v312 = vld [vmem:[#allocation3 + $0x8] sm:$0xff]
          %v313 = vld [vmem:[#allocation3 + $0x10] sm:$0xff]
          %v314 = vld [vmem:[#allocation3 + $0x18] sm:$0xff]
          %v315 = vld [vmem:[#allocation3 + $0x20] sm:$0xff]
          %v316 = vld [vmem:[#allocation3 + $0x28] sm:$0xff]
          %v317 = vld [vmem:[#allocation3 + $0x30] sm:$0xff]
          %v318 = vld [vmem:[#allocation3 + $0x38] sm:$0xff]
          %319 = vmax.xlane.f32.xlu0 %v311
          %v320 = vpop.xlane.xlu0 %319
          %321 = vmax.xlane.f32.xlu0 %v312
          %v322 = vpop.xlane.xlu0 %321
          %323 = vmax.xlane.f32.xlu0 %v313
          %v324 = vpop.xlane.xlu0 %323
          %325 = vmax.xlane.f32.xlu0 %v314
          %v326 = vpop.xlane.xlu0 %325
          %327 = vmax.xlane.f32.xlu0 %v315
          %v328 = vpop.xlane.xlu0 %327
          %329 = vmax.xlane.f32.xlu0 %v316
          %v330 = vpop.xlane.xlu0 %329
          %331 = vmax.xlane.f32.xlu0 %v317
          %v332 = vpop.xlane.xlu0 %331
          %333 = vmax.xlane.f32.xlu0 %v318
          %v334 = vpop.xlane.xlu0 %333
          %v343 = vlaneseq
          %v344 = vand.u32 %v343, 127
          %v345 = vlaneseq
          %v346 = vshrl.u32 %v345, 7
          %v347 = vsub.s32 %v344, %v346
          %v348 = vrot.slane %v303, %v347
          %v349 = vadd.s32 %v344, 4294967288
          %v350 = vlaneseq
          %v351 = vshrl.u32 %v350, 7
          %v352 = vsub.s32 %v349, %v351
          %v353 = vrot.slane %v304, %v352
          %vm354 = vcmask 130112
          %v355 = vsel %vm354, %v353, %v348
          %v356 = vadd.s32 %v344, 4294967280
          %v357 = vlaneseq
          %v358 = vshrl.u32 %v357, 7
          %v359 = vsub.s32 %v356, %v358
          %v360 = vrot.slane %v305, %v359
          %vm361 = vcmask 195712
          %v362 = vsel %vm361, %v360, %v355
          %v363 = vadd.s32 %v344, 4294967272
          %v364 = vlaneseq
          %v365 = vshrl.u32 %v364, 7
          %v366 = vsub.s32 %v363, %v365
          %v367 = vrot.slane %v306, %v366
          %vm368 = vcmask 261312
          %v369 = vsel %vm368, %v367, %v362
          %v370 = vlaneseq
          %v371 = vshrl.u32 %v370, 7
          %v372 = vsub.s32 %v344, %v371
          %v373 = vrot.slane %v307, %v372
          %v374 = vlaneseq
          %v375 = vshrl.u32 %v374, 7
          %v376 = vsub.s32 %v349, %v375
          %v377 = vrot.slane %v308, %v376
          %v378 = vsel %vm354, %v377, %v373
          %v379 = vlaneseq
          %v380 = vshrl.u32 %v379, 7
          %v381 = vsub.s32 %v356, %v380
          %v382 = vrot.slane %v309, %v381
          %v383 = vsel %vm361, %v382, %v378
          %v384 = vlaneseq
          %v385 = vshrl.u32 %v384, 7
          %v386 = vsub.s32 %v363, %v385
          %v387 = vrot.slane %v310, %v386
          %v388 = vsel %vm368, %v387, %v383
          %vm389 = vcmask 1041409
          %v390 = vsel %vm389, %v388, %v369
          %v400 = vlaneseq
          %v401 = vshrl.u32 %v400, 7
          %v402 = vsub.s32 %v344, %v401
          %v403 = vrot.slane %v320, %v402
          %v404 = vlaneseq
          %v405 = vshrl.u32 %v404, 7
          %v406 = vsub.s32 %v349, %v405
          %v407 = vrot.slane %v322, %v406
          %v408 = vsel %vm354, %v407, %v403
          %v409 = vlaneseq
          %v410 = vshrl.u32 %v409, 7
          %v411 = vsub.s32 %v356, %v410
          %v412 = vrot.slane %v324, %v411
          %v413 = vsel %vm361, %v412, %v408
          %v414 = vlaneseq
          %v415 = vshrl.u32 %v414, 7
          %v416 = vsub.s32 %v363, %v415
          %v417 = vrot.slane %v326, %v416
          %v418 = vsel %vm368, %v417, %v413
          %v419 = vlaneseq
          %v420 = vshrl.u32 %v419, 7
          %v421 = vsub.s32 %v344, %v420
          %v422 = vrot.slane %v328, %v421
          %v423 = vlaneseq
          %v424 = vshrl.u32 %v423, 7
          %v425 = vsub.s32 %v349, %v424
          %v426 = vrot.slane %v330, %v425
          %v427 = vsel %vm354, %v426, %v422
          %v428 = vlaneseq
          %v429 = vshrl.u32 %v428, 7
          %v430 = vsub.s32 %v356, %v429
          %v431 = vrot.slane %v332, %v430
          %v432 = vsel %vm361, %v431, %v427
          %v433 = vlaneseq
          %v434 = vshrl.u32 %v433, 7
          %v435 = vsub.s32 %v363, %v434
          %v436 = vrot.slane %v334, %v435
          %v437 = vsel %vm368, %v436, %v432
          %vm438 = vcmask 1043459
          %v439 = vsel %vm438, %v437, %v418
          %vm441 = vcmask 1041408
          %v442 = vsel %vm441, %v390, %v439
          %v443 = vld [vmem:[%s1] sm:$0xff]
          %v444 = vld [vmem:[%s1 + $0x8] sm:$0xff]
          %v445 = vld [vmem:[%s1 + $0x10] sm:$0xff]
          %v446 = vld [vmem:[%s1 + $0x18] sm:$0xff]
          %vm447 = vcmask 261120
          %v449 = vsel %vm447, %v442, 0
          %451 = vmatprep.subr.mxu0 0.0
          %452 = vmatpush1.msra.mxu0 %v443
          %453 = vmatprep.subr.mxu0 0.0
          %454 = vmatpush1.msra.mxu0 %v444
          %455 = vmatprep.subr.mxu0 0.0
          %456 = vmatpush1.msra.mxu0 %v445
          %457 = vmatprep.subr.mxu0 0.0
          %458 = vmatpush1.msra.mxu0 %v446
          %459 = vmatprep.subr.mxu0 0.0
          %460 = vmatpush1.msra.mxu0 0.0
          %461 = vmatprep.subr.mxu0 0.0
          %462 = vmatpush1.msra.mxu0 0.0
          %463 = vmatprep.subr.mxu0 0.0
          %464 = vmatpush1.msra.mxu0 0.0
          %465 = vmatprep.subr.mxu0 0.0
          %466 = vmatpush1.msra.mxu0 0.0
          %467 = vmatprep.subr.mxu0 0.0
          %468 = vmatpush1.msra.mxu0 0.0
          %469 = vmatprep.subr.mxu0 0.0
          %470 = vmatpush1.msra.mxu0 0.0
          %471 = vmatprep.subr.mxu0 0.0
          %472 = vmatpush1.msra.mxu0 0.0
          %473 = vmatprep.subr.mxu0 0.0
          %474 = vmatpush1.msra.mxu0 0.0
          %475 = vmatprep.subr.mxu0 0.0
          %476 = vmatpush1.msra.mxu0 0.0
          %477 = vmatprep.subr.mxu0 0.0
          %478 = vmatpush1.msra.mxu0 0.0
          %479 = vmatprep.subr.mxu0 0.0
          %480 = vmatpush1.msra.mxu0 0.0
          %481 = vmatprep.subr.mxu0 0.0
          %482 = vmatpush1.msra.mxu0 0.0
          %483 = vmatprep.subr.mxu0 0.0
          %484 = vmatpush1.msra.mxu0 0.0
          %485 = vmatprep.subr.mxu0 0.0
          %486 = vmatpush1.msra.mxu0 0.0
          %487 = vmatprep.subr.mxu0 0.0
          %488 = vmatpush1.msra.mxu0 0.0
          %489 = vmatprep.subr.mxu0 0.0
          %490 = vmatpush1.msra.mxu0 0.0
          %491 = vmatprep.subr.mxu0 0.0
          %492 = vmatpush1.msra.mxu0 0.0
          %493 = vmatprep.subr.mxu0 0.0
          %494 = vmatpush1.msra.mxu0 0.0
          %495 = vmatprep.subr.mxu0 0.0
          %496 = vmatpush1.msra.mxu0 0.0
          %497 = vmatprep.subr.mxu0 0.0
          %498 = vmatpush1.msra.mxu0 0.0
          %499 = vmatprep.subr.mxu0 0.0
          %500 = vmatpush1.msra.mxu0 0.0
          %501 = vmatprep.subr.mxu0 0.0
          %502 = vmatpush1.msra.mxu0 0.0
          %503 = vmatprep.subr.mxu0 0.0
          %504 = vmatpush1.msra.mxu0 0.0
          %505 = vmatprep.subr.mxu0 0.0
          %506 = vmatpush1.msra.mxu0 0.0
          %507 = vmatprep.subr.mxu0 0.0
          %508 = vmatpush1.msra.mxu0 0.0
          %509 = vmatprep.subr.mxu0 0.0
          %510 = vmatpush1.msra.mxu0 0.0
          %511 = vmatprep.subr.mxu0 0.0
          %512 = vmatpush1.msra.mxu0 0.0
          %513 = vmatprep.subr.mxu0 0.0
          %514 = vmatpush1.msra.mxu0 0.0
          %515 = vmatprep.mubr.f32.mxu0 0.0
          %516 = vmatmul.mubr.f32.gmra.mrb[0].mxu0 %v449
          %v517 = vpop.f32.mrb[0].mxu0
          %v518 = vadd.f32 0.0, %v517
          %v519 = vpop.f32.mrb[0].mxu0
          %520 = vdwg.mxu0
          %v521 = vmax.f32 %v518, 0.0
          %v522 = vld [vmem:[%s2] sm:$0xf]
          %vm523 = vcmask 31744
          %v525 = vsel %vm523, %v521, 0
          %vm527 = vcmask 1043456
          %v529 = vsel %vm527, %v522, 0
          %531 = vmatprep.subr.mxu0 0.0
          %532 = vmatpush1.msra.mxu0 %v529
          %533 = vmatprep.subr.mxu0 0.0
          %534 = vmatpush1.msra.mxu0 0.0
          %535 = vmatprep.subr.mxu0 0.0
          %536 = vmatpush1.msra.mxu0 0.0
          %537 = vmatprep.subr.mxu0 0.0
          %538 = vmatpush1.msra.mxu0 0.0
          %539 = vmatprep.subr.mxu0 0.0
          %540 = vmatpush1.msra.mxu0 0.0
          %541 = vmatprep.subr.mxu0 0.0
          %542 = vmatpush1.msra.mxu0 0.0
          %543 = vmatprep.subr.mxu0 0.0
          %544 = vmatpush1.msra.mxu0 0.0
          %545 = vmatprep.subr.mxu0 0.0
          %546 = vmatpush1.msra.mxu0 0.0
          %547 = vmatprep.subr.mxu0 0.0
          %548 = vmatpush1.msra.mxu0 0.0
          %549 = vmatprep.subr.mxu0 0.0
          %550 = vmatpush1.msra.mxu0 0.0
          %551 = vmatprep.subr.mxu0 0.0
          %552 = vmatpush1.msra.mxu0 0.0
          %553 = vmatprep.subr.mxu0 0.0
          %554 = vmatpush1.msra.mxu0 0.0
          %555 = vmatprep.subr.mxu0 0.0
          %556 = vmatpush1.msra.mxu0 0.0
          %557 = vmatprep.subr.mxu0 0.0
          %558 = vmatpush1.msra.mxu0 0.0
          %559 = vmatprep.subr.mxu0 0.0
          %560 = vmatpush1.msra.mxu0 0.0
          %561 = vmatprep.subr.mxu0 0.0
          %562 = vmatpush1.msra.mxu0 0.0
          %563 = vmatprep.subr.mxu0 0.0
          %564 = vmatpush1.msra.mxu0 0.0
          %565 = vmatprep.subr.mxu0 0.0
          %566 = vmatpush1.msra.mxu0 0.0
          %567 = vmatprep.subr.mxu0 0.0
          %568 = vmatpush1.msra.mxu0 0.0
          %569 = vmatprep.subr.mxu0 0.0
          %570 = vmatpush1.msra.mxu0 0.0
          %571 = vmatprep.subr.mxu0 0.0
          %572 = vmatpush1.msra.mxu0 0.0
          %573 = vmatprep.subr.mxu0 0.0
          %574 = vmatpush1.msra.mxu0 0.0
          %575 = vmatprep.subr.mxu0 0.0
          %576 = vmatpush1.msra.mxu0 0.0
          %577 = vmatprep.subr.mxu0 0.0
          %578 = vmatpush1.msra.mxu0 0.0
          %579 = vmatprep.subr.mxu0 0.0
          %580 = vmatpush1.msra.mxu0 0.0
          %581 = vmatprep.subr.mxu0 0.0
          %582 = vmatpush1.msra.mxu0 0.0
          %583 = vmatprep.subr.mxu0 0.0
          %584 = vmatpush1.msra.mxu0 0.0
          %585 = vmatprep.subr.mxu0 0.0
          %586 = vmatpush1.msra.mxu0 0.0
          %587 = vmatprep.subr.mxu0 0.0
          %588 = vmatpush1.msra.mxu0 0.0
          %589 = vmatprep.subr.mxu0 0.0
          %590 = vmatpush1.msra.mxu0 0.0
          %591 = vmatprep.subr.mxu0 0.0
          %592 = vmatpush1.msra.mxu0 0.0
          %593 = vmatprep.subr.mxu0 0.0
          %594 = vmatpush1.msra.mxu0 0.0
          %595 = vmatprep.mubr.f32.mxu0 0.0
          %596 = vmatmul.mubr.f32.gmra.mrb[0].mxu0 %v525
          %v597 = vpop.f32.mrb[0].mxu0
          %v598 = vadd.f32 0.0, %v597
          %v599 = vpop.f32.mrb[0].mxu0
          %600 = vdwg.mxu0
          %v602 = vrot.slane %v598, 2
          %v604 = vadd.f32 %v598, %v602
          %v605 = vxor.u32 %v604, 2147483648
          %v606 = vmul.f32 %v605, 1.442695
          %v607 = vpow.pop %v606
          %v608 = vadd.f32 %v607, 1.0
          %v609 = vrcp.pop %v608
          %v610 = vmul.f32 1.0, %v609
          %vm611 = vcmask 254976
          %612 = vst.msk [vmem:[#allocation7] sm:$0x3] %vm611, %v610
        $region44: #{tpu_custom_call.1} parent=31 // pred_fallthru
          _
        // Predicated region
        $region45: #{tpu_custom_call.1} parent=31 // pred_check
          %p613 = pneg %p118
        $region46: #{tpu_custom_call.1} parent=31 // pred_check_branch
          %615 = sbr.rel (%p613) target = $region48
        $region47: #{tpu_custom_call.1} parent=31 // pred_region
          %s617 = ssub.s32 32, 32
          %618 = vsyncadd [#allocation6], %s617
          %s619 = smul.addr %s22, 32
          %s620 = scalar_lea.hbm %s3, %s619
          %s622 = sshll.u32 [#allocation7], 4
          %s623 = int_to_ptr.vmem [resolvable:$true] %s622
          %625 = dma.vmem_to_hbm [thread:$0]  %s623, 32, %s620, [#allocation6]
        $region48: #{tpu_custom_call.1} parent=31 // pred_fallthru
          _
        // Predicated region
        $region49: #{tpu_custom_call.1} parent=31 // pred_check
          %p626 = pneg %p118
        $region50: #{tpu_custom_call.1} parent=31 // pred_check_branch
          %628 = sbr.rel (%p626) target = $region52
        $region51: #{tpu_custom_call.1} parent=31 // pred_region
          %629 = dma.done [#allocation6], 32
        $region52: #{tpu_custom_call.1} parent=31 // pred_fallthru
          _
      $region32: #{tpu_custom_call.1} parent=5 // pred_fallthru
        _
      %p630 = scmp.le.s32.totalorder 2, %s13
      // Predicated region
      $region53: #{tpu_custom_call.1} parent=5 // pred_check
        %p631 = pneg %p630
      $region54: #{tpu_custom_call.1} parent=5 // pred_check_branch
        %633 = sbr.rel (%p631) target = $region56
      $region55: #{tpu_custom_call.1} parent=5 // pred_region
        %s634 = ssub.s32 %s13, 2
      $region56: #{tpu_custom_call.1} parent=5 // pred_fallthru
        _
    $region6: #{tpu_custom_call.1} parent=1 // loop_footer
      %s17 = sadd.s32 1, %s13
    $region7: #{tpu_custom_call.1} parent=1 // loop_footer_branch
      %12 = sbr.rel target = $region3
    $region8: #{tpu_custom_call.1} parent=1 // loop_exit
      _
    %635 = vsyncpa [#allocation5], 1
    %s636 = scalar_lea.sflag [#allocation5], 1
    %637 = vsyncpa %s636, 1
    %638 = vsyncpa [#allocation6], 1
    %s639 = scalar_lea.sflag [#allocation6], 1
    %640 = vsyncpa %s639, 1

</llo_original>
